<compile_context>
chip_gen: v5e
topology: v5e:2x2
jax: 0.10.0
libtpu: 0.0.40
codegen_flags: <defaults>
</compile_context>

<pallas_src>
import jax
import jax.numpy as jnp
from jax.experimental import pallas as pl
from jax.experimental.pallas import tpu as pltpu


def _round_up(x, m):
    return (x + m - 1) // m * m


def _default_lane_align():
    """256-lane alignment on v6e/v7x (full MXU tile width), 128 otherwise."""
    try:
        kind = jax.devices()[0].device_kind.lower()
        if "v6" in kind or "v7" in kind:
            return 256
    except Exception:
        pass
    return 128


# ----------------------------------------------------------------------------
# Kernel: one fused GEMM for both heads, two lane-dense output stores.
# ----------------------------------------------------------------------------
def _fpn_predictor_kernel(x_ref, w_ref, b_ref, cls_ref, bbox_ref):
    x = x_ref[...]
    if x.dtype != w_ref.dtype:
        # In-kernel cast (e.g. f32 activations -> bf16 weights path); avoids a
        # wrapper-side astype that would re-write/re-read all of x in HBM.
        x = x.astype(w_ref.dtype)
    # (tile_n, C) @ (C, out_pad) with f32 accumulation on the MXU.
    acc = jnp.dot(x, w_ref[...], preferred_element_type=jnp.float32)
    acc = acc + b_ref[...]                       # (1, out_pad) f32 bias row
    cls_pad = cls_ref.shape[-1]                  # multiple of 128 -> aligned slice
    cls_ref[...] = acc[:, :cls_pad].astype(cls_ref.dtype)
    bbox_ref[...] = acc[:, cls_pad:].astype(bbox_ref.dtype)


# ----------------------------------------------------------------------------
# One-time parameter preparation (keep this OUT of the per-call path).
# ----------------------------------------------------------------------------
def prepare_fpn_predictor_params(cls_w, cls_b, bbox_w, bbox_b,
                                 *, lane_align=None, param_dtype=None):
    """Pre-transpose, lane-pad (per head) and concat the two Linear layers.

    Args:
      cls_w:  (num_classes, C)             -- PyTorch nn.Linear weight layout
      cls_b:  (num_classes,)
      bbox_w: (num_bbox_reg_classes*4, C)
      bbox_b: (num_bbox_reg_classes*4,)
      lane_align: per-head output padding multiple.  None -> auto per TPU
                  generation (256 on v6e/v7x, 128 on v5e).
      param_dtype: optional dtype for the fused weight (jnp.bfloat16
                   recommended on all generations; mandatory to get off the
                   slow f32 MXU path on v5e).  Bias stays f32 (added to the
                   f32 accumulator).
    """
    if lane_align is None:
        lane_align = _default_lane_align()

    cls_w = jnp.asarray(cls_w)
    bbox_w = jnp.asarray(bbox_w)
    num_classes = cls_w.shape[0]
    num_bbox_out = bbox_w.shape[0]
    cls_pad = _round_up(num_classes, lane_align)
    bbox_pad = _round_up(num_bbox_out, lane_align)

    w_cls = jnp.pad(cls_w.T, ((0, 0), (0, cls_pad - num_classes)))    # (C, cls_pad)
    w_bbox = jnp.pad(bbox_w.T, ((0, 0), (0, bbox_pad - num_bbox_out)))  # (C, bbox_pad)
    w_cat = jnp.concatenate([w_cls, w_bbox], axis=1)                  # (C, out_pad)

    b_cls = jnp.pad(jnp.asarray(cls_b), (0, cls_pad - num_classes))
    b_bbox = jnp.pad(jnp.asarray(bbox_b), (0, bbox_pad - num_bbox_out))
    b_cat = jnp.concatenate([b_cls, b_bbox])[None, :]                 # (1, out_pad)

    if param_dtype is not None:
        w_cat = w_cat.astype(param_dtype)
    b_cat = b_cat.astype(jnp.float32)

    return {
        "w_cat": w_cat,                 # (C, cls_pad + bbox_pad)
        "b_cat": b_cat,                 # (1, cls_pad + bbox_pad) f32
        "num_classes": num_classes,
        "num_bbox_out": num_bbox_out,
        "cls_pad": cls_pad,
        "bbox_pad": bbox_pad,
    }


# ----------------------------------------------------------------------------
# Forward pass.
# ----------------------------------------------------------------------------
def fpn_predictor(x, params, *, tile_n=512, return_padded=False):
    """Forward of FPNPredictor.

    Args:
      x: (N, C) or (N, C, 1, 1) ROI features (any float dtype).
      params: dict from prepare_fpn_predictor_params().
      tile_n: ROI-dimension tile size (multiple of 8; auto-clamped).
      return_padded: if True, return the lane-padded head buffers (padding
                     columns are exactly zero) so downstream ops can fuse the
                     slice; if False, return the module's exact output shapes.

    Returns:
      (cls_logit (N, num_classes), bbox_pred (N, num_bbox_reg_classes*4))
    """
    if x.ndim == 4:
        assert x.shape[2:] == (1, 1), "expected spatial dims [1, 1]"
        x = x.reshape(x.shape[0], -1)

    w_cat = params["w_cat"]
    b_cat = params["b_cat"]
    num_classes = params["num_classes"]
    num_bbox_out = params["num_bbox_out"]
    cls_pad = params["cls_pad"]
    bbox_pad = params["bbox_pad"]

    N, C = x.shape
    assert w_cat.shape[0] == C, "in_channels mismatch with prepared params"
    out_pad = cls_pad + bbox_pad
    orig_dtype = x.dtype

    # Guard the empty-ROI case (zero-length grid would not compile).
    if N == 0:
        cls0 = jnp.zeros((0, cls_pad if return_padded else num_classes), orig_dtype)
        bbox0 = jnp.zeros((0, bbox_pad if return_padded else num_bbox_out), orig_dtype)
        return cls0, bbox0

    # --- tile the ROI dimension (ragged last block handled by Pallas) ------
    tile_n = max(8, min(int(tile_n), _round_up(N, 8)))
    tile_n = _round_up(tile_n, 8)
    if N >= 16:
        # >= 2 grid steps: lets the "parallel" axis shard across both TCs on
        # v7x; ~free on the single-TC v5e/v6e chips.
        tile_n = min(tile_n, _round_up(pl.cdiv(N, 2), 8))
    grid = (pl.cdiv(N, tile_n),)

    # --- cost estimate & VMEM budget ---------------------------------------
    x_bytes = jnp.dtype(x.dtype).itemsize
    w_bytes = jnp.dtype(w_cat.dtype).itemsize
    o_bytes = jnp.dtype(orig_dtype).itemsize
    flops = 2 * N * C * out_pad
    bytes_accessed = (N * C * x_bytes
                      + C * out_pad * w_bytes
                      + out_pad * 4
                      + N * out_pad * o_bytes)
    cost = pl.CostEstimate(flops=int(flops), transcendentals=0,
                           bytes_accessed=int(bytes_accessed))

    # Double-buffered x / output tiles + (double-buffered, though constant)
    # weights and bias, with 2x headroom, capped well below v7x's 64 MiB VMEM.
    vmem_need = (2 * tile_n * C * x_bytes
                 + 2 * C * out_pad * w_bytes
                 + 2 * out_pad * 4
                 + 2 * tile_n * out_pad * o_bytes)
    vmem_limit = int(min(48 * 1024 * 1024, max(2 * vmem_need, 16 * 1024 * 1024)))

    cls_out, bbox_out = pl.pallas_call(
        _fpn_predictor_kernel,
        out_shape=(jax.ShapeDtypeStruct((N, cls_pad), orig_dtype),
                   jax.ShapeDtypeStruct((N, bbox_pad), orig_dtype)),
        grid=grid,
        in_specs=[
            pl.BlockSpec((tile_n, C), lambda i: (i, 0)),      # x tile streams
            pl.BlockSpec((C, out_pad), lambda i: (0, 0)),     # weights resident
            pl.BlockSpec((1, out_pad), lambda i: (0, 0)),     # bias resident
        ],
        out_specs=[
            pl.BlockSpec((tile_n, cls_pad), lambda i: (i, 0)),
            pl.BlockSpec((tile_n, bbox_pad), lambda i: (i, 0)),
        ],
        compiler_params=pltpu.CompilerParams(
            dimension_semantics=("parallel",),
            vmem_limit_bytes=vmem_limit,
        ),
        cost_estimate=cost,
    )(x, w_cat, b_cat)

    if return_padded:
        return cls_out, bbox_out
    return cls_out[:, :num_classes], bbox_out[:, :num_bbox_out]


# ----------------------------------------------------------------------------
# Deterministic parameter init mirroring the module's __init__.
# ----------------------------------------------------------------------------
def init_fpn_predictor_params(key, in_channels, num_classes,
                              cls_agnostic_bbox_reg=False):
    num_bbox_reg_classes = 2 if cls_agnostic_bbox_reg else num_classes
    k1, k2 = jax.random.split(key)
    cls_w = 0.01 * jax.random.normal(k1, (num_classes, in_channels), jnp.float32)
    cls_b = jnp.zeros((num_classes,), jnp.float32)
    bbox_w = 0.001 * jax.random.normal(
        k2, (num_bbox_reg_classes * 4, in_channels), jnp.float32)
    bbox_b = jnp.zeros((num_bbox_reg_classes * 4,), jnp.float32)
    return cls_w, cls_b, bbox_w, bbox_b


if __name__ == "__main__":
    key = jax.random.PRNGKey(0)
    kx, kp = jax.random.split(key)

    # Small synthetic shapes consistent with the module's forward:
    # ROI pooled features of shape (N, C, 1, 1) after the box head.
    # N chosen so the run exercises BOTH a multi-step grid and a ragged last
    # block (tile_n gets clamped to 16 -> grid of 2 steps, last block partial).
    N = 24             # number of ROIs (not a multiple of the tile)
    C = 32             # in_channels / representation_size
    NUM_CLASSES = 16   # cfg.MODEL.ROI_BOX_HEAD.NUM_CLASSES

    x = jax.random.normal(kx, (N, C, 1, 1), jnp.float32)
    cls_w, cls_b, bbox_w, bbox_b = init_fpn_predictor_params(
        kp, in_channels=C, num_classes=NUM_CLASSES, cls_agnostic_bbox_reg=False)

    # Plain-JAX reference (same math as PyTorch nn.Linear).
    x2d = x.reshape(N, -1)
    ref_cls = jnp.dot(x2d, cls_w.T, precision=jax.lax.Precision.HIGHEST) + cls_b
    ref_bbox = jnp.dot(x2d, bbox_w.T, precision=jax.lax.Precision.HIGHEST) + bbox_b

    # ---- f32 path (tight tolerance) ---------------------------------------
    params_f32 = prepare_fpn_predictor_params(cls_w, cls_b, bbox_w, bbox_b)
    cls_logit, bbox_pred = fpn_predictor(x, params_f32)
    jax.block_until_ready((cls_logit, bbox_pred))
    assert cls_logit.shape == (N, NUM_CLASSES)
    assert bbox_pred.shape == (N, NUM_CLASSES * 4)
    assert jnp.allclose(cls_logit, ref_cls, atol=1e-5, rtol=1e-5)
    assert jnp.allclose(bbox_pred, ref_bbox, atol=1e-5, rtol=1e-5)

    # ---- bf16-weight path (looser tolerance; the production config) -------
    params_bf16 = prepare_fpn_predictor_params(cls_w, cls_b, bbox_w, bbox_b,
                                               param_dtype=jnp.bfloat16)
    cls_bf16, bbox_bf16 = fpn_predictor(x, params_bf16)
    jax.block_until_ready((cls_bf16, bbox_bf16))
    assert cls_bf16.shape == (N, NUM_CLASSES)
    assert bbox_bf16.shape == (N, NUM_CLASSES * 4)
    assert jnp.allclose(cls_bf16, ref_cls, atol=2e-2, rtol=5e-2)
    assert jnp.allclose(bbox_bf16, ref_bbox, atol=2e-2, rtol=5e-2)

    # ---- padded-output path (zero-copy handoff to downstream consumers) ---
    cls_padded, bbox_padded = fpn_predictor(x, params_f32, return_padded=True)
    jax.block_until_ready((cls_padded, bbox_padded))
    assert jnp.allclose(cls_padded[:, :NUM_CLASSES], ref_cls, atol=1e-5, rtol=1e-5)
    assert jnp.all(cls_padded[:, NUM_CLASSES:] == 0)

    print("KERNEL_OK")
</pallas_src>

<mosaic_0001>
module attributes {stable_mosaic.version = 11 : i64} {
  func.func @_fpn_predictor_kernel(%arg0: i32, %arg1: memref<16x32xf32, #tpu.memory_space<vmem>>, %arg2: memref<32x256xf32, #tpu.memory_space<vmem>>, %arg3: memref<1x256xf32, #tpu.memory_space<vmem>>, %arg4: memref<16x128xf32, #tpu.memory_space<vmem>>, %arg5: memref<16x128xf32, #tpu.memory_space<vmem>>) attributes {dimension_semantics = [#tpu.dimension_semantics<parallel>], iteration_bounds = array<i64: 2>, scalar_prefetch = 0 : i64, scratch_operands = 0 : i64, tpu.core_type = #tpu.core_type<tc>, window_params = [{transform_indices = @transform_0, window_bounds = array<i64: 16, 32>}, {pipeline_mode = #tpu.pipeline_mode<synchronous>, transform_indices = @transform_1, window_bounds = array<i64: 32, 256>}, {pipeline_mode = #tpu.pipeline_mode<synchronous>, transform_indices = @transform_2, window_bounds = array<i64: 1, 256>}, {transform_indices = @transform_3, window_bounds = array<i64: 16, 128>}, {transform_indices = @transform_4, window_bounds = array<i64: 16, 128>}]} {
    %c0 = arith.constant 0 : index
    %c0_0 = arith.constant 0 : index
    %0 = vector.load %arg1[%c0, %c0_0] : memref<16x32xf32, #tpu.memory_space<vmem>>, vector<16x32xf32>
    %c0_1 = arith.constant 0 : index
    %c0_2 = arith.constant 0 : index
    %1 = vector.load %arg2[%c0_1, %c0_2] : memref<32x256xf32, #tpu.memory_space<vmem>>, vector<32x256xf32>
    %cst = arith.constant dense<0.000000e+00> : vector<16x256xf32>
    %2 = tpu.matmul %0, %1, %cst {dimension_numbers = #tpu.dot_dimension_numbers<[1], [0], [0], [1], [0, 0, 1, 1], [], []>} : vector<16x32xf32>, vector<32x256xf32>, vector<16x256xf32> -> vector<16x256xf32>
    %c0_3 = arith.constant 0 : index
    %c0_4 = arith.constant 0 : index
    %3 = vector.load %arg3[%c0_3, %c0_4] : memref<1x256xf32, #tpu.memory_space<vmem>>, vector<1x256xf32>
    %4 = vector.broadcast %3 : vector<1x256xf32> to vector<16x256xf32>
    %5 = arith.addf %2, %4 : vector<16x256xf32>
    %6 = vector.extract_strided_slice %5 {offsets = [0, 0], sizes = [16, 128], strides = [1, 1]} : vector<16x256xf32> to vector<16x128xf32>
    %c0_5 = arith.constant 0 : index
    %c0_6 = arith.constant 0 : index
    %7 = vector.load %arg4[%c0_5, %c0_6] : memref<16x128xf32, #tpu.memory_space<vmem>>, vector<16x128xf32>
    tpu.vector_store %arg4[%c0_5, %c0_6], %6 {strides = array<i32>} : memref<16x128xf32, #tpu.memory_space<vmem>>, vector<16x128xf32>,
    %8 = vector.extract_strided_slice %5 {offsets = [0, 128], sizes = [16, 128], strides = [1, 1]} : vector<16x256xf32> to vector<16x128xf32>
    %c0_7 = arith.constant 0 : index
    %c0_8 = arith.constant 0 : index
    %9 = vector.load %arg5[%c0_7, %c0_8] : memref<16x128xf32, #tpu.memory_space<vmem>>, vector<16x128xf32>
    tpu.vector_store %arg5[%c0_7, %c0_8], %8 {strides = array<i32>} : memref<16x128xf32, #tpu.memory_space<vmem>>, vector<16x128xf32>,
    return
  }
  func.func @transform_0(%arg0: i32) -> (i32, i32) {
    %c0_i32 = arith.constant 0 : i32
    %c0_i32_0 = arith.constant 0 : i32
    return %arg0, %c0_i32 : i32, i32
  }
  func.func @transform_1(%arg0: i32) -> (i32, i32) {
    %c0_i32 = arith.constant 0 : i32
    %c0_i32_0 = arith.constant 0 : i32
    %c0_i32_1 = arith.constant 0 : i32
    return %c0_i32, %c0_i32_0 : i32, i32
  }
  func.func @transform_2(%arg0: i32) -> (i32, i32) {
    %c0_i32 = arith.constant 0 : i32
    %c0_i32_0 = arith.constant 0 : i32
    %c0_i32_1 = arith.constant 0 : i32
    return %c0_i32, %c0_i32_0 : i32, i32
  }
  func.func @transform_3(%arg0: i32) -> (i32, i32) {
    %c0_i32 = arith.constant 0 : i32
    %c0_i32_0 = arith.constant 0 : i32
    return %arg0, %c0_i32 : i32, i32
  }
  func.func @transform_4(%arg0: i32) -> (i32, i32) {
    %c0_i32 = arith.constant 0 : i32
    %c0_i32_0 = arith.constant 0 : i32
    return %arg0, %c0_i32 : i32, i32
  }
}

</mosaic_0001>

<llo_original>
// kernel: tpu_custom_call.1
$region0: #{tpu_custom_call.1}
  #allocation0 [shape = 'u32[]', space=smem, size = 0x4, offset = 0x4, fixed_abs, tag = 'smem constant byte address 0x4 - core index']
  #allocation1 [shape = 'u32[72,128]{1,0:T(1,128)}', space=vmem, size = 0x9000, scoped, tag = 'internal scratch']
  %s0 = inlined_call_operand.hbm [shape: f32[24,32], index: 0, kind: input, shape index: {}]
  %s1 = inlined_call_operand.hbm [shape: f32[32,256], index: 1, kind: input, shape index: {}]
  %s2 = inlined_call_operand.hbm [shape: f32[1,256], index: 2, kind: input, shape index: {}]
  %s3 = inlined_call_operand.hbm [shape: f32[24,128], index: 3, kind: output, shape index: {0}]
  %s4 = inlined_call_operand.hbm [shape: f32[24,128], index: 4, kind: output, shape index: {1}]
  %5 = xla_tuple %s3, %s4
  %s6 = sld [smem:[#allocation0]]
  $region65: #{tpu_custom_call.1} parent=0
    _
  %s8 = ssub.s32 1, %s6
  %s9 = scalar_select 0, %s8, %s6
  $region1: #{tpu_custom_call.1} parent=0
    #allocation2 [shape = 'u8[16384]{0}', space=vmem, size = 0x4000, scoped, tag = 'input window, operand 0']
    #allocation3 [shape = 's32[2]{0}', space=sflag, size = 0x8, scoped, tag = 'scoped memory for tpu_custom_call.1']
    #allocation4 [shape = 's32[2]{0}', space=sflag, size = 0x8, scoped, tag = 'scoped memory for tpu_custom_call.1']
    #allocation5 [shape = 'u8[32768]{0}', space=vmem, size = 0x8000, scoped, tag = 'input window, operand 1, single buffered']
    #allocation6 [shape = 's32[1]{0}', space=sflag, size = 0x4, scoped, tag = 'scoped memory for tpu_custom_call.1']
    #allocation7 [shape = 'u8[1024]{0}', space=vmem, size = 0x400, scoped, tag = 'input window, operand 2, single buffered']
    #allocation8 [shape = 'u8[16384]{0}', space=vmem, size = 0x4000, scoped, tag = 'output window, operand 0']
    #allocation9 [shape = 'u8[16384]{0}', space=vmem, size = 0x4000, scoped, tag = 'output window, operand 1']
    #allocation10 [shape = 's32[2]{0}', space=sflag, size = 0x8, scoped, tag = 'scoped memory for tpu_custom_call.1']
    %10 = vsyncpa [#allocation3], 0
    %s11 = scalar_lea.sflag [#allocation3], 1
    %12 = vsyncpa %s11, 0
    %13 = vsyncpa [#allocation6], 0
    %14 = vsyncpa [#allocation4], 0
    %s15 = scalar_lea.sflag [#allocation4], 1
    %16 = vsyncpa %s15, 0
    %17 = vsyncpa [#allocation10], 0
    %s18 = scalar_lea.sflag [#allocation10], 1
    %19 = vsyncpa %s18, 0
    loop: start=0, step=1, limit=4
    $region2: #{tpu_custom_call.1} parent=1 // loop_pre_header
      _
    $region3: #{tpu_custom_call.1} parent=1 // loop_header
      %s21 = sphi 0, %s25
      %p22 = scmp.ge.s32.totalorder %s21, 4
      %s31 = sphi 0, %s33
      %s34 = sphi 0, %s31
      %s35 = sphi 0, %s34
      %s51 = sphi 0, %s35
      %s55 = sphi 0, %s55
      %s57 = sphi 0, %s55
      %s58 = sphi 0, %s57
      %s72 = sphi 0, %s58
      %s76 = sphi 0, %s76
      %s78 = sphi 0, %s76
      %s79 = sphi 0, %s78
      %s93 = sphi 0, %s79
      %s99 = sphi 0, %s101
      %s102 = sphi 0, %s99
      %s103 = sphi 0, %s102
      %s119 = sphi 0, %s103
      %s125 = sphi 0, %s127
      %s128 = sphi 0, %s125
      %s129 = sphi 0, %s128
      %s145 = sphi 0, %s129
    $region4: #{tpu_custom_call.1} parent=1 // loop_header_branch
      %24 = sbr.rel (%p22) target = $region8
    $region5: #{tpu_custom_call.1} parent=1 // loop_body
      %s26 = ssub.s32 %s21, 1
      %s27 = ssub.s32 %s21, 2
      %s28 = sadd.s32 %s21, 1
      %s29 = ssub.s32 %s21, %s28
      %p30 = scmp.eq.s32.totalorder %s29, 0
      %s32 = sadd.s32 %s31, 1
      %s33 = scalar_select %p30, %s31, %s32
      %p36 = pneg %p30
      %p37 = scmp.eq.s32.totalorder %s21, 1
      %p38 = por %p36, %p37
      %p39 = scmp.ne.s32.totalorder %s31, %s34
      %p40 = scmp.eq.s32.totalorder %s21, 0
      %p41 = por %p39, %p40
      %p42 = scmp.ne.s32.totalorder %s31, %s34
      %p43 = scmp.eq.s32.totalorder %s26, 1
      %p44 = por %p42, %p43
      %p45 = scmp.ne.s32.totalorder %s34, %s35
      %p46 = scmp.eq.s32.totalorder %s26, 0
      %p47 = por %p45, %p46
      %p48 = scmp.ne.s32.totalorder %s34, %s35
      %p49 = scmp.eq.s32.totalorder %s27, 1
      %p50 = por %p48, %p49
      %p52 = scmp.ne.s32.totalorder %s35, %s51
      %p53 = scmp.eq.s32.totalorder %s27, 0
      %p54 = por %p52, %p53
      %s56 = sadd.s32 %s55, 1
      %p59 = scmp.eq.s32.totalorder %s21, 1
      %p60 = scmp.ne.s32.totalorder %s55, %s57
      %p61 = scmp.eq.s32.totalorder %s21, 0
      %p62 = por %p60, %p61
      %p63 = scmp.ne.s32.totalorder %s55, %s57
      %p64 = scmp.eq.s32.totalorder %s26, 1
      %p65 = por %p63, %p64
      %p66 = scmp.ne.s32.totalorder %s57, %s58
      %p67 = scmp.eq.s32.totalorder %s26, 0
      %p68 = por %p66, %p67
      %p69 = scmp.ne.s32.totalorder %s57, %s58
      %p70 = scmp.eq.s32.totalorder %s27, 1
      %p71 = por %p69, %p70
      %p73 = scmp.ne.s32.totalorder %s58, %s72
      %p74 = scmp.eq.s32.totalorder %s27, 0
      %p75 = por %p73, %p74
      %s77 = sadd.s32 %s76, 1
      %p80 = scmp.eq.s32.totalorder %s21, 1
      %p81 = scmp.ne.s32.totalorder %s76, %s78
      %p82 = scmp.eq.s32.totalorder %s21, 0
      %p83 = por %p81, %p82
      %p84 = scmp.ne.s32.totalorder %s76, %s78
      %p85 = scmp.eq.s32.totalorder %s26, 1
      %p86 = por %p84, %p85
      %p87 = scmp.ne.s32.totalorder %s78, %s79
      %p88 = scmp.eq.s32.totalorder %s26, 0
      %p89 = por %p87, %p88
      %p90 = scmp.ne.s32.totalorder %s78, %s79
      %p91 = scmp.eq.s32.totalorder %s27, 1
      %p92 = por %p90, %p91
      %p94 = scmp.ne.s32.totalorder %s79, %s93
      %p95 = scmp.eq.s32.totalorder %s27, 0
      %p96 = por %p94, %p95
      %s97 = ssub.s32 %s21, %s28
      %p98 = scmp.eq.s32.totalorder %s97, 0
      %s100 = sadd.s32 %s99, 1
      %s101 = scalar_select %p98, %s99, %s100
      %p104 = pneg %p98
      %p105 = scmp.eq.s32.totalorder %s21, 1
      %p106 = por %p104, %p105
      %p107 = scmp.ne.s32.totalorder %s99, %s102
      %p108 = scmp.eq.s32.totalorder %s21, 0
      %p109 = por %p107, %p108
      %p110 = scmp.ne.s32.totalorder %s99, %s102
      %p111 = scmp.eq.s32.totalorder %s26, 1
      %p112 = por %p110, %p111
      %p113 = scmp.ne.s32.totalorder %s102, %s103
      %p114 = scmp.eq.s32.totalorder %s26, 0
      %p115 = por %p113, %p114
      %p116 = scmp.ne.s32.totalorder %s102, %s103
      %p117 = scmp.eq.s32.totalorder %s27, 1
      %p118 = por %p116, %p117
      %p120 = scmp.ne.s32.totalorder %s103, %s119
      %p121 = scmp.eq.s32.totalorder %s27, 0
      %p122 = por %p120, %p121
      %s123 = ssub.s32 %s21, %s28
      %p124 = scmp.eq.s32.totalorder %s123, 0
      %s126 = sadd.s32 %s125, 1
      %s127 = scalar_select %p124, %s125, %s126
      %p130 = pneg %p124
      %p131 = scmp.eq.s32.totalorder %s21, 1
      %p132 = por %p130, %p131
      %p133 = scmp.ne.s32.totalorder %s125, %s128
      %p134 = scmp.eq.s32.totalorder %s21, 0
      %p135 = por %p133, %p134
      %p136 = scmp.ne.s32.totalorder %s125, %s128
      %p137 = scmp.eq.s32.totalorder %s26, 1
      %p138 = por %p136, %p137
      %p139 = scmp.ne.s32.totalorder %s128, %s129
      %p140 = scmp.eq.s32.totalorder %s26, 0
      %p141 = por %p139, %p140
      %p142 = scmp.ne.s32.totalorder %s128, %s129
      %p143 = scmp.eq.s32.totalorder %s27, 1
      %p144 = por %p142, %p143
      %p146 = scmp.ne.s32.totalorder %s129, %s145
      %p147 = scmp.eq.s32.totalorder %s27, 0
      %p148 = por %p146, %p147
      %p149 = scmp.le.s32.totalorder 1, %s21
      %p150 = scmp.lt.s32.totalorder %s21, 3
      %p151 = pnand %p149, %p150
      %p152 = pneg %p151
      // Predicated region
      $region9: #{tpu_custom_call.1} parent=5 // pred_check
        _
      $region10: #{tpu_custom_call.1} parent=5 // pred_check_branch
        %154 = sbr.rel (%p151) target = $region12
      $region11: #{tpu_custom_call.1} parent=5 // pred_region
        %s155 = ssub.s32 %s21, 1
        // Predicated region
        $region13: #{tpu_custom_call.1} parent=11 // pred_check
          %p156 = pneg %p68
        $region14: #{tpu_custom_call.1} parent=11 // pred_check_branch
          %158 = sbr.rel (%p156) target = $region16
        $region15: #{tpu_custom_call.1} parent=11 // pred_region
          %160 = vsyncadd [#allocation6], 0
          %s161 = sshll.u32 %s1, 4
          %s162 = int_to_ptr.hbm [resolvable:$true] %s161
          %s163 = sshll.u32 [#allocation5], 4
          %s164 = int_to_ptr.vmem [resolvable:$true] %s163
          %169 = dma.hbm_to_vmem [thread:$0]  %s162, 1024, %s164, [#allocation6], 256, 256, 16
        $region16: #{tpu_custom_call.1} parent=11 // pred_fallthru
          _
        // Predicated region
        $region17: #{tpu_custom_call.1} parent=11 // pred_check
          %p170 = pneg %p89
        $region18: #{tpu_custom_call.1} parent=11 // pred_check_branch
          %172 = sbr.rel (%p170) target = $region20
        $region19: #{tpu_custom_call.1} parent=11 // pred_region
          %174 = vsyncadd [#allocation6], 0
          %s176 = sshll.u32 %s2, 4
          %s177 = int_to_ptr.hbm [resolvable:$true] %s176
          %s178 = sshll.u32 [#allocation7], 4
          %s179 = int_to_ptr.vmem [resolvable:$true] %s178
          %181 = dma.hbm_to_vmem [thread:$0]  %s177, 32, %s179, [#allocation6]
        $region20: #{tpu_custom_call.1} parent=11 // pred_fallthru
          _
      $region12: #{tpu_custom_call.1} parent=5 // pred_fallthru
        _
      %p182 = scmp.lt.s32.totalorder %s21, 2
      // Predicated region
      $region21: #{tpu_custom_call.1} parent=5 // pred_check
        %p183 = pneg %p182
      $region22: #{tpu_custom_call.1} parent=5 // pred_check_branch
        %185 = sbr.rel (%p183) target = $region24
      $region23: #{tpu_custom_call.1} parent=5 // pred_region
        // Predicated region
        $region25: #{tpu_custom_call.1} parent=23 // pred_check
          %p186 = pneg %p41
        $region26: #{tpu_custom_call.1} parent=23 // pred_check_branch
          %188 = sbr.rel (%p186) target = $region28
        $region27: #{tpu_custom_call.1} parent=23 // pred_region
          %s189 = sand.u32 %s31, 1
          %s190 = scalar_lea.sflag [#allocation3], %s189
          %s191 = sand.u32 %s31, 1
          %s192 = smul.addr %s191, 16
          %s193 = scalar_lea.vmem [#allocation2], %s192
          %s194 = smul.u32 2, %s21
          %s195 = ssub.s32 3, %s194
          %p196 = scmp.lt.s32.totalorder %s195, 2
          %s197 = scalar_select %p196, %s195, 2
          %s198 = smul.u32 8, %s197
          %s199 = ssub.s32 16, %s198
          %s200 = sshll.u32 %s199, 4
          %201 = vsyncadd %s190, %s200
          %p202 = scmp.ne.s32.totalorder 0, %s198
          %s203 = smul.addr %s194, 8
          %s204 = scalar_lea.hbm %s0, %s203
          %s205 = smul.u32 8, %s197
          %s206 = sshll.u32 %s204, 4
          %s207 = int_to_ptr.hbm [resolvable:$true] %s206
          %s208 = sshll.u32 %s193, 4
          %s209 = int_to_ptr.vmem [resolvable:$true] %s208
          %s210 = sshll.u32 %s205, 4
          %214 = dma.hbm_to_vmem [thread:$0]  (%p202), %s207, %s210, %s209, %s190, 128, 128, 8
        $region28: #{tpu_custom_call.1} parent=23 // pred_fallthru
          _
      $region24: #{tpu_custom_call.1} parent=5 // pred_fallthru
        _
      %p215 = scmp.le.s32.totalorder 1, %s21
      %p216 = scmp.lt.s32.totalorder %s21, 3
      %p217 = pnand %p215, %p216
      %p218 = pneg %p217
      // Predicated region
      $region29: #{tpu_custom_call.1} parent=5 // pred_check
        _
      $region30: #{tpu_custom_call.1} parent=5 // pred_check_branch
        %220 = sbr.rel (%p217) target = $region32
      $region31: #{tpu_custom_call.1} parent=5 // pred_region
        %s221 = ssub.s32 %s21, 1
        %s222 = sand.u32 %s34, 1
        %s223 = scalar_lea.sflag [#allocation3], %s222
        %s224 = sand.u32 %s34, 1
        %s225 = smul.addr %s224, 16
        %s226 = scalar_lea.vmem [#allocation2], %s225
        // Predicated region
        $region33: #{tpu_custom_call.1} parent=31 // pred_check
          %p227 = pneg %p47
        $region34: #{tpu_custom_call.1} parent=31 // pred_check_branch
          %229 = sbr.rel (%p227) target = $region36
        $region35: #{tpu_custom_call.1} parent=31 // pred_region
          %231 = dma.done %s223, 256
        $region36: #{tpu_custom_call.1} parent=31 // pred_fallthru
          _
        // Predicated region
        $region37: #{tpu_custom_call.1} parent=31 // pred_check
          %p232 = pneg %p68
        $region38: #{tpu_custom_call.1} parent=31 // pred_check_branch
          %234 = sbr.rel (%p232) target = $region40
        $region39: #{tpu_custom_call.1} parent=31 // pred_region
          %236 = dma.done [#allocation6], 1024
        $region40: #{tpu_custom_call.1} parent=31 // pred_fallthru
          _
        // Predicated region
        $region41: #{tpu_custom_call.1} parent=31 // pred_check
          %p237 = pneg %p89
        $region42: #{tpu_custom_call.1} parent=31 // pred_check_branch
          %239 = sbr.rel (%p237) target = $region44
        $region43: #{tpu_custom_call.1} parent=31 // pred_region
          %241 = dma.done [#allocation6], 32
        $region44: #{tpu_custom_call.1} parent=31 // pred_fallthru
          _
        %s242 = sand.u32 %s34, 1
        %s243 = scalar_lea.sflag [#allocation3], %s242
        %s244 = sand.u32 %s34, 1
        %s245 = smul.addr %s244, 16
        %s246 = scalar_lea.vmem [#allocation2], %s245
        %p247 = pneg %p47
        %p248 = pneg %p44
        %p249 = pneg %p68
        %p250 = pneg %p65
        %p251 = pneg %p89
        %p252 = pneg %p86
        %p253 = pneg %p115
        %p254 = pneg %p112
        %s255 = sand.u32 %s102, 1
        %s256 = scalar_lea.sflag [#allocation4], %s255
        %s257 = sand.u32 %s102, 1
        %s258 = smul.addr %s257, 16
        %s259 = scalar_lea.vmem [#allocation8], %s258
        %p260 = pneg %p141
        %p261 = pneg %p138
        %s262 = sand.u32 %s128, 1
        %s263 = scalar_lea.sflag [#allocation10], %s262
        %s264 = sand.u32 %s128, 1
        %s265 = smul.addr %s264, 16
        %s266 = scalar_lea.vmem [#allocation9], %s265
        %s267 = smul.u32 2, %s26
        %s268 = ssub.s32 3, %s267
        %p269 = scmp.lt.s32.totalorder %s268, 2
        %s270 = scalar_select %p269, %s268, 2
        %s271 = smul.u32 8, %s270
        %s272 = smul.u32 2, %s26
        %s273 = ssub.s32 3, %s272
        %p274 = scmp.lt.s32.totalorder %s273, 2
        %s275 = scalar_select %p274, %s273, 2
        %s276 = smul.u32 8, %s275
        %s277 = smul.u32 2, %s26
        %s278 = ssub.s32 3, %s277
        %p279 = scmp.lt.s32.totalorder %s278, 2
        %s280 = scalar_select %p279, %s278, 2
        %s281 = smul.u32 8, %s280
        %v282 = vld [vmem:[%s226] sm:$0xff]
        %v283 = vld [vmem:[%s226 + $0x8] sm:$0xff]
        %v284 = vld [vmem:[#allocation5] sm:$0xff]
        %v285 = vld [vmem:[#allocation5 + $0x8] sm:$0xff]
        %v286 = vld [vmem:[#allocation5 + $0x10] sm:$0xff]
        %v287 = vld [vmem:[#allocation5 + $0x18] sm:$0xff]
        %v288 = vld [vmem:[#allocation5 + $0x20] sm:$0xff]
        %v289 = vld [vmem:[#allocation5 + $0x28] sm:$0xff]
        %v290 = vld [vmem:[#allocation5 + $0x30] sm:$0xff]
        %v291 = vld [vmem:[#allocation5 + $0x38] sm:$0xff]
        %v292 = vld [vmem:[#allocation7] sm:$0x3]
        %v294 = vperm.slane %v292, 0
        %v295 = vperm.slane %v292, 1
        %vm298 = vcmask 261120
        %v300 = vsel %vm298, %v282, 0
        %v303 = vsel %vm298, %v283, 0
        %305 = vmatpush.msra.mxu0 0.0
        %306 = vmatpush.msra.mxu0 0.0
        %307 = vmatpush.msra.mxu0 0.0
        %308 = vmatpush.msra.mxu0 0.0
        %309 = vmatpush.msra.mxu0 0.0
        %310 = vmatpush.msra.mxu0 0.0
        %311 = vmatpush.msra.mxu0 0.0
        %312 = vmatpush.msra.mxu0 0.0
        %313 = vmatpush.msra.mxu0 0.0
        %314 = vmatpush.msra.mxu0 0.0
        %315 = vmatpush.msra.mxu0 0.0
        %316 = vmatpush.msra.mxu0 0.0
        %317 = vmatpush.msra.mxu0 %v290
        %318 = vmatpush.msra.mxu0 %v288
        %319 = vmatpush.msra.mxu0 %v286
        %320 = vmatpush.msra.mxu0 %v284
        %321 = vmatmul.f32.gmra.mxu0 %v300
        %v322 = vpop.f32.mrf.mxu0
        %v323 = vadd.f32 %v294, %v322
        %324 = vmatmul.f32.gmra.mxu0 %v303
        %v325 = vpop.f32.mrf.mxu0
        %v326 = vadd.f32 %v294, %v325
        %327 = vdwg.mxu0
        %328 = vmatpush.msra.mxu0 0.0
        %329 = vmatpush.msra.mxu0 0.0
        %330 = vmatpush.msra.mxu0 0.0
        %331 = vmatpush.msra.mxu0 0.0
        %332 = vmatpush.msra.mxu0 0.0
        %333 = vmatpush.msra.mxu0 0.0
        %334 = vmatpush.msra.mxu0 0.0
        %335 = vmatpush.msra.mxu0 0.0
        %336 = vmatpush.msra.mxu0 0.0
        %337 = vmatpush.msra.mxu0 0.0
        %338 = vmatpush.msra.mxu0 0.0
        %339 = vmatpush.msra.mxu0 0.0
        %340 = vmatpush.msra.mxu0 %v291
        %341 = vmatpush.msra.mxu0 %v289
        %342 = vmatpush.msra.mxu0 %v287
        %343 = vmatpush.msra.mxu0 %v285
        %344 = vmatmul.f32.gmra.mxu0 %v300
        %v345 = vpop.f32.mrf.mxu0
        %v346 = vadd.f32 %v295, %v345
        %347 = vmatmul.f32.gmra.mxu0 %v303
        %v348 = vpop.f32.mrf.mxu0
        %v349 = vadd.f32 %v295, %v348
        %350 = vdwg.mxu0
        %351 = vst [vmem:[%s259] sm:$0xff] %v323
        %352 = vst [vmem:[%s259 + $0x8] sm:$0xff] %v326
        %353 = vst [vmem:[%s266] sm:$0xff] %v346
        %354 = vst [vmem:[%s266 + $0x8] sm:$0xff] %v349
        %s355 = sand.u32 %s102, 1
        %s356 = scalar_lea.sflag [#allocation4], %s355
        %s357 = sand.u32 %s102, 1
        %s358 = smul.addr %s357, 16
        %s359 = scalar_lea.vmem [#allocation8], %s358
        %s360 = sand.u32 %s128, 1
        %s361 = scalar_lea.sflag [#allocation10], %s360
        %s362 = sand.u32 %s128, 1
        %s363 = smul.addr %s362, 16
        %s364 = scalar_lea.vmem [#allocation9], %s363
        // Predicated region
        $region45: #{tpu_custom_call.1} parent=31 // pred_check
          %p365 = pneg %p112
        $region46: #{tpu_custom_call.1} parent=31 // pred_check_branch
          %367 = sbr.rel (%p365) target = $region48
        $region47: #{tpu_custom_call.1} parent=31 // pred_region
          %s368 = smul.u32 2, %s26
          %s369 = ssub.s32 3, %s368
          %p370 = scmp.lt.s32.totalorder %s369, 2
          %s371 = scalar_select %p370, %s369, 2
          %s372 = smul.u32 8, %s371
          %s373 = ssub.s32 16, %s372
          %s374 = sshll.u32 %s373, 4
          %375 = vsyncadd %s356, %s374
          %p376 = scmp.ne.s32.totalorder 0, %s372
          %s377 = smul.addr %s368, 8
          %s378 = scalar_lea.hbm %s3, %s377
          %s379 = smul.u32 8, %s371
          %s380 = sshll.u32 %s359, 4
          %s381 = int_to_ptr.vmem [resolvable:$true] %s380
          %s382 = sshll.u32 %s378, 4
          %s383 = int_to_ptr.hbm [resolvable:$true] %s382
          %s384 = sshll.u32 %s379, 4
          %388 = dma.vmem_to_hbm [thread:$0]  (%p376), %s381, %s384, %s383, %s356, 128, 128, 8
        $region48: #{tpu_custom_call.1} parent=31 // pred_fallthru
          _
        // Predicated region
        $region49: #{tpu_custom_call.1} parent=31 // pred_check
          %p389 = pneg %p138
        $region50: #{tpu_custom_call.1} parent=31 // pred_check_branch
          %391 = sbr.rel (%p389) target = $region52
        $region51: #{tpu_custom_call.1} parent=31 // pred_region
          %s392 = smul.u32 2, %s26
          %s393 = ssub.s32 3, %s392
          %p394 = scmp.lt.s32.totalorder %s393, 2
          %s395 = scalar_select %p394, %s393, 2
          %s396 = smul.u32 8, %s395
          %s397 = ssub.s32 16, %s396
          %s398 = sshll.u32 %s397, 4
          %399 = vsyncadd %s361, %s398
          %p400 = scmp.ne.s32.totalorder 0, %s396
          %s401 = smul.addr %s392, 8
          %s402 = scalar_lea.hbm %s4, %s401
          %s403 = smul.u32 8, %s395
          %s404 = sshll.u32 %s364, 4
          %s405 = int_to_ptr.vmem [resolvable:$true] %s404
          %s406 = sshll.u32 %s402, 4
          %s407 = int_to_ptr.hbm [resolvable:$true] %s406
          %s408 = sshll.u32 %s403, 4
          %412 = dma.vmem_to_hbm [thread:$0]  (%p400), %s405, %s408, %s407, %s361, 128, 128, 8
        $region52: #{tpu_custom_call.1} parent=31 // pred_fallthru
          _
      $region32: #{tpu_custom_call.1} parent=5 // pred_fallthru
        _
      %p413 = scmp.le.s32.totalorder 2, %s21
      // Predicated region
      $region53: #{tpu_custom_call.1} parent=5 // pred_check
        %p414 = pneg %p413
      $region54: #{tpu_custom_call.1} parent=5 // pred_check_branch
        %416 = sbr.rel (%p414) target = $region56
      $region55: #{tpu_custom_call.1} parent=5 // pred_region
        %s417 = ssub.s32 %s21, 2
        // Predicated region
        $region57: #{tpu_custom_call.1} parent=55 // pred_check
          %p418 = pneg %p118
        $region58: #{tpu_custom_call.1} parent=55 // pred_check_branch
          %420 = sbr.rel (%p418) target = $region60
        $region59: #{tpu_custom_call.1} parent=55 // pred_region
          %s421 = sand.u32 %s103, 1
          %s422 = scalar_lea.sflag [#allocation4], %s421
          %s423 = sand.u32 %s103, 1
          %s424 = smul.addr %s423, 16
          %s425 = scalar_lea.vmem [#allocation8], %s424
          %427 = dma.done %s422, 256
        $region60: #{tpu_custom_call.1} parent=55 // pred_fallthru
          _
        // Predicated region
        $region61: #{tpu_custom_call.1} parent=55 // pred_check
          %p428 = pneg %p144
        $region62: #{tpu_custom_call.1} parent=55 // pred_check_branch
          %430 = sbr.rel (%p428) target = $region64
        $region63: #{tpu_custom_call.1} parent=55 // pred_region
          %s431 = sand.u32 %s129, 1
          %s432 = scalar_lea.sflag [#allocation10], %s431
          %s433 = sand.u32 %s129, 1
          %s434 = smul.addr %s433, 16
          %s435 = scalar_lea.vmem [#allocation9], %s434
          %437 = dma.done %s432, 256
        $region64: #{tpu_custom_call.1} parent=55 // pred_fallthru
          _
      $region56: #{tpu_custom_call.1} parent=5 // pred_fallthru
        _
    $region6: #{tpu_custom_call.1} parent=1 // loop_footer
      %s25 = sadd.s32 1, %s21
    $region7: #{tpu_custom_call.1} parent=1 // loop_footer_branch
      %20 = sbr.rel target = $region3
    $region8: #{tpu_custom_call.1} parent=1 // loop_exit
      _
    %438 = vsyncpa [#allocation3], 1
    %s439 = scalar_lea.sflag [#allocation3], 1
    %440 = vsyncpa %s439, 1
    %441 = vsyncpa [#allocation6], 1
    %442 = vsyncpa [#allocation4], 1
    %s443 = scalar_lea.sflag [#allocation4], 1
    %444 = vsyncpa %s443, 1
    %445 = vsyncpa [#allocation10], 1
    %s446 = scalar_lea.sflag [#allocation10], 1
    %447 = vsyncpa %s446, 1

</llo_original>
